<compile_context>
chip_gen: v7x
topology: tpu7x:2x2x1
jax: 0.10.0
libtpu: 0.0.40
codegen_flags: <defaults>
</compile_context>

<pallas_src>
import math

import jax
import jax.numpy as jnp
from jax.experimental import pallas as pl
from jax.experimental.pallas import tpu as pltpu

_LANE = 128
_SUBLANE = 8


def make_sinusoidal_pe(max_len: int, d_model: int, dtype=jnp.float32):
    """Same construction as the torch __init__ (plain-JAX glue)."""
    position = jnp.arange(max_len, dtype=jnp.float32)[:, None]               # (L, 1)
    div_term = jnp.exp(
        jnp.arange(0, d_model, 2, dtype=jnp.float32) * -(math.log(10000.0) / d_model)
    )                                                                        # (D/2,)
    ang = position * div_term                                                # (L, D/2)
    # interleave: pe[:, 0::2] = sin, pe[:, 1::2] = cos
    pe = jnp.stack([jnp.sin(ang), jnp.cos(ang)], axis=-1).reshape(max_len, d_model)
    return pe.astype(dtype)


def _choose_tiles(B, C, itemsize, block_budget=2 << 20):
    """Pick (tB, tC) for the flattened (B, C) layout.

    Budget: x-block, out-block (and the bits-block in training) are each
    double-buffered, so a ~2 MiB per-block budget keeps total VMEM use under
    ~20 MiB, which fits the 32 MiB scoped limit we request with headroom.
    """
    # Column tile (lane axis): a multiple of 128, or the full C (always legal).
    if C % _LANE != 0:
        tC = C
    elif C * itemsize * min(B, _SUBLANE) <= block_budget:
        tC = C
    else:
        tC = max(_LANE, min(C, (block_budget // (_SUBLANE * itemsize)) // _LANE * _LANE))
    # Row tile (sublane axis): a multiple of 8, or the full B.
    if B <= _SUBLANE:
        tB = B
    else:
        rows = (block_budget // (tC * itemsize)) // _SUBLANE * _SUBLANE
        tB = min(B, max(_SUBLANE, rows))
    return tB, tC


def positional_encoding_forward(x, pe, *, p: float = 0.1, training: bool = False,
                                seed: int = 0):
    """Pallas forward of PositionalEncoding: dropout(x + pe[:, :S])."""
    B, S, D = x.shape
    C = S * D

    # Pre-cast + flatten pe once in the wrapper (hoisted out of the hot loop).
    pe_flat = pe[:S].astype(x.dtype).reshape(1, C)
    x_flat = x.reshape(B, C)                       # lane-dense last dim (S*D)

    itemsize = jnp.dtype(x.dtype).itemsize
    tB, tC = _choose_tiles(B, C, itemsize)
    grid = (pl.cdiv(B, tB), pl.cdiv(C, tC))

    big_spec = pl.BlockSpec((tB, tC), lambda i, j: (i, j))   # x / bits / out tiles
    pe_spec = pl.BlockSpec((1, tC), lambda i, j: (0, j))     # pe columns (bcast rows)

    cparams = pltpu.CompilerParams(
        # No cross-iteration state -> both axes parallel; v7x megacore can shard.
        dimension_semantics=("parallel", "parallel"),
        # Explicit, with headroom: our tiling needs < ~20 MiB.
        vmem_limit_bytes=32 * 1024 * 1024,
    )

    apply_dropout = bool(training) and p > 0.0

    if apply_dropout:
        # Keep iff bits >= round(p * 2^32); integer-domain test, no float convert.
        thresh = min(0xFFFFFFFF, int(round(p * 2.0 ** 32)))   # Python int -> literal
        keep_scale = float(1.0 / (1.0 - p))
        # Random bits are generated wrapper-side (portable; deterministic per seed,
        # though not bitwise-identical to torch's dropout stream).
        bits = jax.random.bits(jax.random.PRNGKey(seed), (B, C), dtype=jnp.uint32)

        def kernel(x_ref, pe_ref, bits_ref, o_ref):
            # x_ref/bits_ref/o_ref: (tB, tC); pe_ref: (1, tC) -> sublane-broadcast.
            y = x_ref[...] + pe_ref[...]
            keep = bits_ref[...] >= thresh              # P(drop) = p
            o_ref[...] = jnp.where(keep, y * keep_scale, jnp.zeros_like(y))

        out_flat = pl.pallas_call(
            kernel,
            out_shape=jax.ShapeDtypeStruct((B, C), x.dtype),
            grid=grid,
            in_specs=[big_spec, pe_spec, big_spec],
            out_specs=big_spec,
            compiler_params=cparams,
        )(x_flat, pe_flat, bits)
    else:
        def kernel(x_ref, pe_ref, o_ref):
            o_ref[...] = x_ref[...] + pe_ref[...]

        out_flat = pl.pallas_call(
            kernel,
            out_shape=jax.ShapeDtypeStruct((B, C), x.dtype),
            grid=grid,
            in_specs=[big_spec, pe_spec],
            out_specs=big_spec,
            compiler_params=cparams,
        )(x_flat, pe_flat)

    return out_flat.reshape(B, S, D)


if __name__ == "__main__":
    # Module hyper-params (deterministic, in-script).
    d_model = 32
    max_len = 16
    dropout_p = 0.1

    # Small deterministic input consistent with the forward: (batch, seq, d_model).
    B, S = 2, 8
    key = jax.random.PRNGKey(0)
    x = jax.random.normal(key, (B, S, d_model), dtype=jnp.float32)

    pe = make_sinusoidal_pe(max_len, d_model, dtype=jnp.float32)

    # Eval-mode forward (dropout is identity, matching module.eval()).
    out = positional_encoding_forward(x, pe, p=dropout_p, training=False)
    out = jax.block_until_ready(out)

    ref = x + pe[None, :S, :]
    assert out.shape == (B, S, d_model)
    assert jnp.allclose(out, ref, atol=1e-6, rtol=1e-6)

    # Training-mode forward: every element must be either dropped (0) or the
    # reference value scaled by 1/(1-p).
    out_tr = positional_encoding_forward(x, pe, p=dropout_p, training=True, seed=1234)
    out_tr = jax.block_until_ready(out_tr)
    scaled = ref / (1.0 - dropout_p)
    ok = (out_tr == 0.0) | jnp.isclose(out_tr, scaled, atol=1e-5, rtol=1e-5)
    assert bool(jnp.all(ok))

    print("KERNEL_OK")
</pallas_src>

<mosaic_0001>
module attributes {stable_mosaic.version = 11 : i64} {
  func.func @kernel(%arg0: i32, %arg1: i32, %arg2: memref<2x256xf32, #tpu.memory_space<vmem>>, %arg3: memref<1x256xf32, #tpu.memory_space<vmem>>, %arg4: memref<2x256xf32, #tpu.memory_space<vmem>>) attributes {dimension_semantics = [#tpu.dimension_semantics<parallel>, #tpu.dimension_semantics<parallel>], iteration_bounds = array<i64: 1, 1>, scalar_prefetch = 0 : i64, scratch_operands = 0 : i64, tpu.core_type = #tpu.core_type<tc>, window_params = [{transform_indices = @transform_0, window_bounds = array<i64: 2, 256>}, {transform_indices = @transform_1, window_bounds = array<i64: 1, 256>}, {transform_indices = @transform_2, window_bounds = array<i64: 2, 256>}]} {
    %c0 = arith.constant 0 : index
    %c0_0 = arith.constant 0 : index
    %0 = vector.load %arg2[%c0, %c0_0] : memref<2x256xf32, #tpu.memory_space<vmem>>, vector<2x256xf32>
    %c0_1 = arith.constant 0 : index
    %c0_2 = arith.constant 0 : index
    %1 = vector.load %arg3[%c0_1, %c0_2] : memref<1x256xf32, #tpu.memory_space<vmem>>, vector<1x256xf32>
    %2 = vector.broadcast %1 : vector<1x256xf32> to vector<2x256xf32>
    %3 = arith.addf %0, %2 : vector<2x256xf32>
    %c0_3 = arith.constant 0 : index
    %c0_4 = arith.constant 0 : index
    %4 = vector.load %arg4[%c0_3, %c0_4] : memref<2x256xf32, #tpu.memory_space<vmem>>, vector<2x256xf32>
    tpu.vector_store %arg4[%c0_3, %c0_4], %3 {strides = array<i32>} : memref<2x256xf32, #tpu.memory_space<vmem>>, vector<2x256xf32>,
    return
  }
  func.func @transform_0(%arg0: i32, %arg1: i32) -> (i32, i32) {
    %c0_i32 = arith.constant 0 : i32
    return %arg0, %arg1 : i32, i32
  }
  func.func @transform_1(%arg0: i32, %arg1: i32) -> (i32, i32) {
    %c0_i32 = arith.constant 0 : i32
    %c0_i32_0 = arith.constant 0 : i32
    return %c0_i32, %arg1 : i32, i32
  }
  func.func @transform_2(%arg0: i32, %arg1: i32) -> (i32, i32) {
    %c0_i32 = arith.constant 0 : i32
    return %arg0, %arg1 : i32, i32
  }
}

</mosaic_0001>

<llo_original>
// kernel: tpu_custom_call.1
$region0: #{tpu_custom_call.1}
  #allocation0 [shape = 'u32[]', space=smem, size = 0x4, offset = 0x4, fixed_abs, tag = 'smem constant byte address 0x4 - core index']
  #allocation1 [shape = 'u32[144,128]{1,0:T(1,128)}', space=vmem, size = 0x12000, scoped, tag = 'internal scratch']
  %s0 = inlined_call_operand.hbm [shape: f32[2,256], index: 0, kind: input, shape index: {}]
  %s1 = inlined_call_operand.vmem [shape: f32[1,256], index: 1, kind: input, shape index: {}]
  %s2 = inlined_call_operand.hbm [shape: f32[2,256], index: 2, kind: output, shape index: {}]
  %s3 = sld [smem:[#allocation0]]
  $region22: #{tpu_custom_call.1} parent=0
    _
  %s5 = ssub.s32 1, %s3
  %s6 = scalar_select 0, %s5, %s3
  $region1: #{tpu_custom_call.1} parent=0
    #allocation2 [shape = 'u8[2048]{0}', space=vmem, size = 0x800, scoped, tag = 'input window, operand 0, single buffered']
    #allocation3 [shape = 's32[1]{0}', space=sflag, size = 0x4, scoped, tag = 'scoped memory for tpu_custom_call.1']
    #allocation4 [shape = 's32[1]{0}', space=sflag, size = 0x4, scoped, tag = 'scoped memory for tpu_custom_call.1']
    #allocation5 [shape = 'u8[2048]{0}', space=vmem, size = 0x800, scoped, tag = 'output window, operand 0, single buffered']
    %7 = vsyncpa [#allocation3], 0
    %8 = vsyncpa [#allocation4], 0
    // Predicated region
    $region2: #{tpu_custom_call.1} parent=1 // pred_check
      _
    $region3: #{tpu_custom_call.1} parent=1 // pred_check_branch
      %10 = sbr.rel (0) target = $region5
    $region4: #{tpu_custom_call.1} parent=1 // pred_region
      %s12 = ssub.s32 64, 64
      %13 = vsyncadd [#allocation3], %s12
      %s15 = sshll.u32 [#allocation2], 4
      %s16 = int_to_ptr.vmem [resolvable:$true] %s15
      %18 = dma.hbm_to_vmem [thread:$0]  %s0, 64, %s16, [#allocation3]
    $region5: #{tpu_custom_call.1} parent=1 // pred_fallthru
      _
    // Predicated region
    $region6: #{tpu_custom_call.1} parent=1 // pred_check
      _
    $region7: #{tpu_custom_call.1} parent=1 // pred_check_branch
      %20 = sbr.rel (0) target = $region9
    $region8: #{tpu_custom_call.1} parent=1 // pred_region
      _
    $region9: #{tpu_custom_call.1} parent=1 // pred_fallthru
      _
    // Predicated region
    $region10: #{tpu_custom_call.1} parent=1 // pred_check
      _
    $region11: #{tpu_custom_call.1} parent=1 // pred_check_branch
      %22 = sbr.rel (0) target = $region13
    $region12: #{tpu_custom_call.1} parent=1 // pred_region
      %23 = dma.done [#allocation3], 64
    $region13: #{tpu_custom_call.1} parent=1 // pred_fallthru
      _
    %v24 = vld [vmem:[#allocation2] sm:$0xf]
    %v25 = vld [vmem:[%s1] sm:$0x3]
    %v27 = vlaneseq
    %v28 = vshrl.u32 %v27, 7
    %v29 = vsub.s32 0, %v28
    %v30 = vrot.slane %v25, %v29
    %v31 = vlaneseq
    %v32 = vshrl.u32 %v31, 7
    %v33 = vsub.s32 1, %v32
    %v34 = vrot.slane %v25, %v33
    %v35 = vcombine.low %v30, %v34
    %v37 = vunpack.c.l.s4 1983009808
    %v38 = vunpack.c.0.s8 %v37
    %v39 = vlaneseq
    %v40 = vshrl.u32 %v39, 7
    %v41 = vsub.s32 %v38, %v40
    %v42 = vrot.slane %v35, %v41
    %v44 = vadd.f32 %v24, %v42
    %45 = vst [vmem:[#allocation5] sm:$0xf] %v44
    // Predicated region
    $region14: #{tpu_custom_call.1} parent=1 // pred_check
      _
    $region15: #{tpu_custom_call.1} parent=1 // pred_check_branch
      %47 = sbr.rel (0) target = $region17
    $region16: #{tpu_custom_call.1} parent=1 // pred_region
      %s49 = ssub.s32 64, 64
      %50 = vsyncadd [#allocation4], %s49
      %s52 = sshll.u32 [#allocation5], 4
      %s53 = int_to_ptr.vmem [resolvable:$true] %s52
      %55 = dma.vmem_to_hbm [thread:$0]  %s53, 64, %s2, [#allocation4]
    $region17: #{tpu_custom_call.1} parent=1 // pred_fallthru
      _
    // Predicated region
    $region18: #{tpu_custom_call.1} parent=1 // pred_check
      _
    $region19: #{tpu_custom_call.1} parent=1 // pred_check_branch
      %57 = sbr.rel (0) target = $region21
    $region20: #{tpu_custom_call.1} parent=1 // pred_region
      %58 = dma.done [#allocation4], 64
    $region21: #{tpu_custom_call.1} parent=1 // pred_fallthru
      _
    %59 = vsyncpa [#allocation3], 1
    %60 = vsyncpa [#allocation4], 1

</llo_original>
